<compile_context>
chip_gen: v7x
topology: tpu7x:2x2x1
jax: 0.10.0
libtpu: 0.0.40
codegen_flags: <defaults>
</compile_context>

<pallas_src>
import jax
import jax.numpy as jnp
from jax import lax
from jax.experimental import pallas as pl
from jax.experimental.pallas import tpu as pltpu


def _round_up(n, m):
    return ((n + m - 1) // m) * m


def l2_linear_head_kernel(x_ref, w_ref, b_ref, o_ref):
    # x_ref: (Bp, Fp) f32, w_ref: (Cp, Fp) f32 (nn.Linear layout),
    # b_ref: (1, Cp) f32, o_ref: (Bp, Cp) f32
    x = x_ref[...]
    w = w_ref[...]

    # Per-row inverse L2 norm. rsqrt(max(||x||^2, 1e-24)) == 1 / max(||x||, 1e-12),
    # identical to torch.nn.functional.normalize(p=2, dim=1).
    sq = jnp.sum(x * x, axis=1, keepdims=True)           # (Bp, 1)
    inv = lax.rsqrt(jnp.maximum(sq, 1e-24))               # (Bp, 1), EUP rsqrt

    # Contract over the feature axis of BOTH operands (no w.T materialization);
    # normalization is applied as a post-matmul row scale on (Bp, Cp).
    out = lax.dot_general(
        x, w,
        dimension_numbers=(((1,), (1,)), ((), ())),
        preferred_element_type=jnp.float32)                # (Bp, Cp)

    o_ref[...] = out * inv + b_ref[...]


def l2noetf_forward(x, weight, bias):
    """x: (B, F) f32, weight: (C, F) f32 (nn.Linear layout), bias: (C,) f32."""
    B, F = x.shape
    C, F2 = weight.shape
    assert F == F2

    # Lane-dense padding: last dims -> multiples of 128, batch -> multiple of 8.
    # Zero padding is exact: padded F columns contribute nothing to norms or
    # dot products; padded classes / padded batch rows are sliced off below.
    Bp = _round_up(max(B, 8), 8)
    Fp = _round_up(max(F, 128), 128)
    Cp = _round_up(max(C, 128), 128)

    xp = jnp.pad(x.astype(jnp.float32), ((0, Bp - B), (0, Fp - F)))
    wp = jnp.pad(weight.astype(jnp.float32), ((0, Cp - C), (0, Fp - F)))
    bp = jnp.pad(bias.astype(jnp.float32).reshape(1, C), ((0, 0), (0, Cp - C)))

    out = pl.pallas_call(
        l2_linear_head_kernel,
        out_shape=jax.ShapeDtypeStruct((Bp, Cp), jnp.float32),
        in_specs=[
            pl.BlockSpec(memory_space=pltpu.MemorySpace.VMEM),
            pl.BlockSpec(memory_space=pltpu.MemorySpace.VMEM),
            pl.BlockSpec(memory_space=pltpu.MemorySpace.VMEM),
        ],
        out_specs=pl.BlockSpec(memory_space=pltpu.MemorySpace.VMEM),
    )(xp, wp, bp)

    return out[:B, :C]


def reference_forward(x, weight, bias):
    # Pure-JAX reference mirroring the PyTorch head semantics:
    # F.normalize(x, dim=1) @ W.T + b
    norm = jnp.sqrt(jnp.sum(x * x, axis=1, keepdims=True))
    xn = x / jnp.maximum(norm, 1e-12)
    return xn @ weight.T + bias[None, :]


if __name__ == "__main__":
    key = jax.random.PRNGKey(0)
    # ResNet_s head shapes: pooled feature dim = 64, num_classes = 10.
    batch, feat_dim, class_num = 8, 64, 10

    kx, kw, kb = jax.random.split(key, 3)
    x = jax.random.normal(kx, (batch, feat_dim), dtype=jnp.float32)

    # Deterministic parameter init mimicking nn.Linear defaults.
    bound = 1.0 / jnp.sqrt(jnp.float32(feat_dim))
    weight = jax.random.uniform(
        kw, (class_num, feat_dim), dtype=jnp.float32, minval=-bound, maxval=bound)
    bias = jax.random.uniform(
        kb, (class_num,), dtype=jnp.float32, minval=-bound, maxval=bound)

    out = jax.block_until_ready(l2noetf_forward(x, weight, bias))
    ref = reference_forward(x, weight, bias)

    assert out.shape == (batch, class_num)
    assert jnp.allclose(out, ref, atol=1e-5, rtol=1e-5), "mismatch vs reference"

    print("KERNEL_OK")
</pallas_src>

<mosaic_0001>
module attributes {stable_mosaic.version = 11 : i64} {
  func.func @l2_linear_head_kernel(%arg0: memref<8x128xf32, #tpu.memory_space<vmem>>, %arg1: memref<128x128xf32, #tpu.memory_space<vmem>>, %arg2: memref<1x128xf32, #tpu.memory_space<vmem>>, %arg3: memref<8x128xf32, #tpu.memory_space<vmem>>) attributes {dimension_semantics = [], scalar_prefetch = 0 : i64, scratch_operands = 0 : i64, tpu.core_type = #tpu.core_type<tc>} {
    %c0 = arith.constant 0 : index
    %c0_0 = arith.constant 0 : index
    %0 = vector.load %arg0[%c0, %c0_0] : memref<8x128xf32, #tpu.memory_space<vmem>>, vector<8x128xf32>
    %c0_1 = arith.constant 0 : index
    %c0_2 = arith.constant 0 : index
    %1 = vector.load %arg1[%c0_1, %c0_2] : memref<128x128xf32, #tpu.memory_space<vmem>>, vector<128x128xf32>
    %2 = arith.mulf %0, %0 : vector<8x128xf32>
    %cst = arith.constant dense<0.000000e+00> : vector<8xf32>
    %3 = vector.multi_reduction <add>, %2, %cst [1] : vector<8x128xf32> to vector<8xf32>
    %4 = vector.shape_cast %3 : vector<8xf32> to vector<8x1xf32>
    %cst_3 = arith.constant 1.000000e-24 : f32
    %5 = vector.broadcast %cst_3 : f32 to vector<8x1xf32>
    %6 = arith.maximumf %4, %5 : vector<8x1xf32>
    %7 = math.rsqrt %6 : vector<8x1xf32>
    %cst_4 = arith.constant dense<0.000000e+00> : vector<8x128xf32>
    %8 = tpu.matmul %0, %1, %cst_4 {dimension_numbers = #tpu.dot_dimension_numbers<[1], [1], [0], [0], [0, 0, 1, 0], [], []>} : vector<8x128xf32>, vector<128x128xf32>, vector<8x128xf32> -> vector<8x128xf32>
    %9 = vector.broadcast %7 : vector<8x1xf32> to vector<8x128xf32>
    %10 = arith.mulf %8, %9 : vector<8x128xf32>
    %c0_5 = arith.constant 0 : index
    %c0_6 = arith.constant 0 : index
    %11 = vector.load %arg2[%c0_5, %c0_6] : memref<1x128xf32, #tpu.memory_space<vmem>>, vector<1x128xf32>
    %12 = vector.broadcast %11 : vector<1x128xf32> to vector<8x128xf32>
    %13 = arith.addf %10, %12 : vector<8x128xf32>
    %c0_7 = arith.constant 0 : index
    %c0_8 = arith.constant 0 : index
    %14 = vector.load %arg3[%c0_7, %c0_8] : memref<8x128xf32, #tpu.memory_space<vmem>>, vector<8x128xf32>
    tpu.vector_store %arg3[%c0_7, %c0_8], %13 {strides = array<i32>} : memref<8x128xf32, #tpu.memory_space<vmem>>, vector<8x128xf32>,
    return
  }
}

</mosaic_0001>

<llo_original>
// kernel: tpu_custom_call.1
$region0: #{tpu_custom_call.1}
  #allocation0 [shape = 'u32[]', space=smem, size = 0x4, offset = 0x4, fixed_abs, tag = 'smem constant byte address 0x4 - core index']
  #allocation1 [shape = 'u32[144,128]{1,0:T(1,128)}', space=vmem, size = 0x12000, scoped, tag = 'internal scratch']
  %s0 = inlined_call_operand.hbm [shape: f32[8,128], index: 0, kind: input, shape index: {}]
  %s1 = inlined_call_operand.hbm [shape: f32[128,128], index: 1, kind: input, shape index: {}]
  %s2 = inlined_call_operand.vmem [shape: f32[1,128], index: 2, kind: input, shape index: {}]
  %s3 = inlined_call_operand.hbm [shape: f32[8,128], index: 3, kind: output, shape index: {}]
  %s4 = sld [smem:[#allocation0]]
  $region30: #{tpu_custom_call.1} parent=0
    _
  %s6 = ssub.s32 1, %s4
  %s7 = scalar_select 0, %s6, %s4
  $region1: #{tpu_custom_call.1} parent=0
    #allocation2 [shape = 'u8[4096]{0}', space=vmem, size = 0x1000, scoped, tag = 'input window, operand 0, single buffered']
    #allocation3 [shape = 's32[1]{0}', space=sflag, size = 0x4, scoped, tag = 'scoped memory for tpu_custom_call.1']
    #allocation4 [shape = 's32[1]{0}', space=sflag, size = 0x4, scoped, tag = 'scoped memory for tpu_custom_call.1']
    #allocation5 [shape = 'u8[65536]{0}', space=vmem, size = 0x10000, scoped, tag = 'input window, operand 1, single buffered']
    #allocation6 [shape = 's32[1]{0}', space=sflag, size = 0x4, scoped, tag = 'scoped memory for tpu_custom_call.1']
    #allocation7 [shape = 'u8[4096]{0}', space=vmem, size = 0x1000, scoped, tag = 'output window, operand 0, single buffered']
    %8 = vsyncpa [#allocation3], 0
    %9 = vsyncpa [#allocation6], 0
    %10 = vsyncpa [#allocation4], 0
    // Predicated region
    $region2: #{tpu_custom_call.1} parent=1 // pred_check
      _
    $region3: #{tpu_custom_call.1} parent=1 // pred_check_branch
      %12 = sbr.rel (0) target = $region5
    $region4: #{tpu_custom_call.1} parent=1 // pred_region
      %s14 = ssub.s32 128, 128
      %15 = vsyncadd [#allocation3], %s14
      %s17 = sshll.u32 [#allocation2], 4
      %s18 = int_to_ptr.vmem [resolvable:$true] %s17
      %20 = dma.hbm_to_vmem [thread:$0]  %s0, 128, %s18, [#allocation3]
    $region5: #{tpu_custom_call.1} parent=1 // pred_fallthru
      _
    // Predicated region
    $region6: #{tpu_custom_call.1} parent=1 // pred_check
      _
    $region7: #{tpu_custom_call.1} parent=1 // pred_check_branch
      %22 = sbr.rel (0) target = $region9
    $region8: #{tpu_custom_call.1} parent=1 // pred_region
      %s24 = ssub.s32 2048, 2048
      %25 = vsyncadd [#allocation6], %s24
      %s26 = sshll.u32 [#allocation5], 4
      %s27 = int_to_ptr.vmem [resolvable:$true] %s26
      %32 = dma.hbm_to_vmem [thread:$0]  %s1, 2048, %s27, [#allocation6], 128, 128, 8
    $region9: #{tpu_custom_call.1} parent=1 // pred_fallthru
      _
    // Predicated region
    $region10: #{tpu_custom_call.1} parent=1 // pred_check
      _
    $region11: #{tpu_custom_call.1} parent=1 // pred_check_branch
      %34 = sbr.rel (0) target = $region13
    $region12: #{tpu_custom_call.1} parent=1 // pred_region
      _
    $region13: #{tpu_custom_call.1} parent=1 // pred_fallthru
      _
    // Predicated region
    $region14: #{tpu_custom_call.1} parent=1 // pred_check
      _
    $region15: #{tpu_custom_call.1} parent=1 // pred_check_branch
      %36 = sbr.rel (0) target = $region17
    $region16: #{tpu_custom_call.1} parent=1 // pred_region
      %37 = dma.done [#allocation3], 128
    $region17: #{tpu_custom_call.1} parent=1 // pred_fallthru
      _
    // Predicated region
    $region18: #{tpu_custom_call.1} parent=1 // pred_check
      _
    $region19: #{tpu_custom_call.1} parent=1 // pred_check_branch
      %39 = sbr.rel (0) target = $region21
    $region20: #{tpu_custom_call.1} parent=1 // pred_region
      %40 = dma.done [#allocation6], 2048
    $region21: #{tpu_custom_call.1} parent=1 // pred_fallthru
      _
    %v41 = vld [vmem:[#allocation2] sm:$0xff]
    %v42 = vld [vmem:[#allocation5] sm:$0xff]
    %v43 = vld [vmem:[#allocation5 + $0x8] sm:$0xff]
    %v44 = vld [vmem:[#allocation5 + $0x10] sm:$0xff]
    %v45 = vld [vmem:[#allocation5 + $0x18] sm:$0xff]
    %v46 = vld [vmem:[#allocation5 + $0x20] sm:$0xff]
    %v47 = vld [vmem:[#allocation5 + $0x28] sm:$0xff]
    %v48 = vld [vmem:[#allocation5 + $0x30] sm:$0xff]
    %v49 = vld [vmem:[#allocation5 + $0x38] sm:$0xff]
    %v50 = vld [vmem:[#allocation5 + $0x40] sm:$0xff]
    %v51 = vld [vmem:[#allocation5 + $0x48] sm:$0xff]
    %v52 = vld [vmem:[#allocation5 + $0x50] sm:$0xff]
    %v53 = vld [vmem:[#allocation5 + $0x58] sm:$0xff]
    %v54 = vld [vmem:[#allocation5 + $0x60] sm:$0xff]
    %v55 = vld [vmem:[#allocation5 + $0x68] sm:$0xff]
    %v56 = vld [vmem:[#allocation5 + $0x70] sm:$0xff]
    %v57 = vld [vmem:[#allocation5 + $0x78] sm:$0xff]
    %v58 = vmul.f32 %v41, %v41
    %59 = vadd.xlane.f32.xlu0 %v58
    %v60 = vpop.xlane.xlu0 %59
    %v61 = vmax.f32 %v60, 1e-24
    %v62 = vrsqrt.pop %v61
    %63 = vmatprep.subr.mxu0 0.0
    %64 = vmatpush1.xpose.msra.mxu0 %v42
    %65 = vmatprep.subr.mxu0 0.0
    %66 = vmatpush1.xpose.msra.mxu0 %v43
    %67 = vmatprep.subr.mxu0 0.0
    %68 = vmatpush1.xpose.msra.mxu0 %v44
    %69 = vmatprep.subr.mxu0 0.0
    %70 = vmatpush1.xpose.msra.mxu0 %v45
    %71 = vmatprep.subr.mxu0 0.0
    %72 = vmatpush1.xpose.msra.mxu0 %v46
    %73 = vmatprep.subr.mxu0 0.0
    %74 = vmatpush1.xpose.msra.mxu0 %v47
    %75 = vmatprep.subr.mxu0 0.0
    %76 = vmatpush1.xpose.msra.mxu0 %v48
    %77 = vmatprep.subr.mxu0 0.0
    %78 = vmatpush1.xpose.msra.mxu0 %v49
    %79 = vmatprep.subr.mxu0 0.0
    %80 = vmatpush1.xpose.msra.mxu0 %v50
    %81 = vmatprep.subr.mxu0 0.0
    %82 = vmatpush1.xpose.msra.mxu0 %v51
    %83 = vmatprep.subr.mxu0 0.0
    %84 = vmatpush1.xpose.msra.mxu0 %v52
    %85 = vmatprep.subr.mxu0 0.0
    %86 = vmatpush1.xpose.msra.mxu0 %v53
    %87 = vmatprep.subr.mxu0 0.0
    %88 = vmatpush1.xpose.msra.mxu0 %v54
    %89 = vmatprep.subr.mxu0 0.0
    %90 = vmatpush1.xpose.msra.mxu0 %v55
    %91 = vmatprep.subr.mxu0 0.0
    %92 = vmatpush1.xpose.msra.mxu0 %v56
    %93 = vmatprep.subr.mxu0 0.0
    %94 = vmatpush1.xpose.msra.mxu0 %v57
    %95 = vmatprep.subr.mxu0 0.0
    %96 = vmatpush1.xpose.msra.mxu0 0.0
    %97 = vmatprep.subr.mxu0 0.0
    %98 = vmatpush1.xpose.msra.mxu0 0.0
    %99 = vmatprep.subr.mxu0 0.0
    %100 = vmatpush1.xpose.msra.mxu0 0.0
    %101 = vmatprep.subr.mxu0 0.0
    %102 = vmatpush1.xpose.msra.mxu0 0.0
    %103 = vmatprep.subr.mxu0 0.0
    %104 = vmatpush1.xpose.msra.mxu0 0.0
    %105 = vmatprep.subr.mxu0 0.0
    %106 = vmatpush1.xpose.msra.mxu0 0.0
    %107 = vmatprep.subr.mxu0 0.0
    %108 = vmatpush1.xpose.msra.mxu0 0.0
    %109 = vmatprep.subr.mxu0 0.0
    %110 = vmatpush1.xpose.msra.mxu0 0.0
    %111 = vmatprep.subr.mxu0 0.0
    %112 = vmatpush1.xpose.msra.mxu0 0.0
    %113 = vmatprep.subr.mxu0 0.0
    %114 = vmatpush1.xpose.msra.mxu0 0.0
    %115 = vmatprep.subr.mxu0 0.0
    %116 = vmatpush1.xpose.msra.mxu0 0.0
    %117 = vmatprep.subr.mxu0 0.0
    %118 = vmatpush1.xpose.msra.mxu0 0.0
    %119 = vmatprep.subr.mxu0 0.0
    %120 = vmatpush1.xpose.msra.mxu0 0.0
    %121 = vmatprep.subr.mxu0 0.0
    %122 = vmatpush1.xpose.msra.mxu0 0.0
    %123 = vmatprep.subr.mxu0 0.0
    %124 = vmatpush1.xpose.msra.mxu0 0.0
    %125 = vmatprep.subr.mxu0 0.0
    %126 = vmatpush1.xpose.msra.mxu0 0.0
    %127 = vmatprep.mubr.f32.mxu0 0.0
    %128 = vmatmul.mubr.f32.gmra.mrb[0].mxu0 %v41
    %v129 = vpop.f32.mrb[0].mxu0
    %v130 = vadd.f32 0.0, %v129
    %v131 = vpop.f32.mrb[0].mxu0
    %132 = vdwg.mxu0
    %v133 = vmul.f32 %v130, %v62
    %v134 = vld [vmem:[%s2] sm:$0x1]
    %v136 = vlaneseq
    %v137 = vshrl.u32 %v136, 7
    %v138 = vsub.s32 0, %v137
    %v139 = vrot.slane %v134, %v138
    %v141 = vadd.f32 %v133, %v139
    %142 = vst [vmem:[#allocation7] sm:$0xff] %v141
    // Predicated region
    $region22: #{tpu_custom_call.1} parent=1 // pred_check
      _
    $region23: #{tpu_custom_call.1} parent=1 // pred_check_branch
      %144 = sbr.rel (0) target = $region25
    $region24: #{tpu_custom_call.1} parent=1 // pred_region
      %s146 = ssub.s32 128, 128
      %147 = vsyncadd [#allocation4], %s146
      %s149 = sshll.u32 [#allocation7], 4
      %s150 = int_to_ptr.vmem [resolvable:$true] %s149
      %152 = dma.vmem_to_hbm [thread:$0]  %s150, 128, %s3, [#allocation4]
    $region25: #{tpu_custom_call.1} parent=1 // pred_fallthru
      _
    // Predicated region
    $region26: #{tpu_custom_call.1} parent=1 // pred_check
      _
    $region27: #{tpu_custom_call.1} parent=1 // pred_check_branch
      %154 = sbr.rel (0) target = $region29
    $region28: #{tpu_custom_call.1} parent=1 // pred_region
      %155 = dma.done [#allocation4], 128
    $region29: #{tpu_custom_call.1} parent=1 // pred_fallthru
      _
    %156 = vsyncpa [#allocation3], 1
    %157 = vsyncpa [#allocation6], 1
    %158 = vsyncpa [#allocation4], 1

</llo_original>
